<compile_context>
chip_gen: v5e
topology: v5e:2x2
jax: 0.10.0
libtpu: 0.0.40
codegen_flags: <defaults>
</compile_context>

<pallas_src>
import jax
import jax.numpy as jnp
from jax.experimental import pallas as pl
from jax.experimental.pallas import tpu as pltpu

F_IN = 3               # true input features
H1, H2, H3 = 128, 128, 64
F_OUT = 1              # true output features
MAX_TILE_B = 1024      # rows per grid step; peak VMEM/tile ~1.3 MB -> fine on v5e/v6e/v7x


def _mlp_kernel(x_ref, w1_ref, b1_ref, w2_ref, b2_ref, w3_ref, b3_ref,
                w4_ref, b4_ref, o_ref):
    """Fused inference forward: (Linear+ReLU) x3 + Linear. Dropout == identity."""
    x = x_ref[...]                                   # (tile_b, 3)  f32
    w1 = w1_ref[...]                                 # (3, 128)     f32

    # Layer 1 (true K=3): three VPU column-FMAs instead of a padded MXU matmul
    # (a K=3 MXU pass costs ~as much push time as a 128x128 layer for <3% FLOPs).
    h = (x[:, 0:1] * w1[0:1, :]
         + x[:, 1:2] * w1[1:2, :]
         + x[:, 2:3] * w1[2:3, :]
         + b1_ref[...])
    h = jnp.maximum(h, 0.0)

    # Layers 2 & 3: bf16 MXU matmuls with f32 accumulation (single-pass push).
    h = jnp.dot(h.astype(jnp.bfloat16), w2_ref[...],
                preferred_element_type=jnp.float32)
    h = jnp.maximum(h + b2_ref[...], 0.0)

    h = jnp.dot(h.astype(jnp.bfloat16), w3_ref[...],
                preferred_element_type=jnp.float32)
    h = jnp.maximum(h + b3_ref[...], 0.0)

    # Layer 4 (true N=1): VPU multiply + XLU lane-reduce instead of an MXU push.
    o_ref[...] = jnp.sum(h * w4_ref[...], axis=-1, keepdims=True) + b4_ref[...]


def _round_up(n, m):
    return ((n + m - 1) // m) * m


def _cdiv(a, b):
    return (a + b - 1) // b


def _select_tiling(batch):
    """Balanced batch split: minimal pad rows, >=2 grid steps for v7x when B>64."""
    n_tiles = max(1, _cdiv(batch, MAX_TILE_B))
    if batch > 64:
        n_tiles = max(n_tiles, 2)          # v7x has 2 TCs; give each a grid step
    tile_b = _round_up(_cdiv(batch, n_tiles), 8)
    return tile_b, n_tiles * tile_b


def init_params(key):
    """Deterministic parameter init (uniform, like PyTorch's default Linear init)."""
    params = {}
    dims = [(F_IN, H1), (H1, H2), (H2, H3), (H3, F_OUT)]
    for i, (fan_in, fan_out) in enumerate(dims, start=1):
        key, kw, kb = jax.random.split(key, 3)
        bound = 1.0 / jnp.sqrt(fan_in)
        params[f"w{i}"] = jax.random.uniform(
            kw, (fan_in, fan_out), jnp.float32, -bound, bound)
        params[f"b{i}"] = jax.random.uniform(
            kb, (fan_out,), jnp.float32, -bound, bound)
    return params


def prepare_params(params):
    """One-time (hoisted) layout + dtype prep of the weights for the kernel."""
    return dict(
        w1=params["w1"],                              # (3, 128)   f32  (VPU layer)
        b1=params["b1"].reshape(1, H1),               # (1, 128)   f32
        w2=params["w2"].astype(jnp.bfloat16),         # (128, 128) bf16 (MXU)
        b2=params["b2"].reshape(1, H2),               # (1, 128)   f32
        w3=params["w3"].astype(jnp.bfloat16),         # (128, 64)  bf16 (MXU)
        b3=params["b3"].reshape(1, H3),               # (1, 64)    f32
        w4=params["w4"].reshape(1, H3),               # (1, 64)    f32  (VPU layer)
        b4=params["b4"].reshape(1, F_OUT),            # (1, 1)     f32
    )


def reimbursement_net_forward(x, pp):
    """x: [B, 3] float32, pp: prepare_params(...) output -> [B, 1] float32."""
    batch = x.shape[0]
    # TODO(synk): bucket tile_b to a small fixed set if serving many distinct
    # batch sizes (each distinct tile_b triggers a fresh Mosaic compile).
    tile_b, b_pad = _select_tiling(batch)
    grid = (b_pad // tile_b,)

    x = x.astype(jnp.float32)
    if b_pad != batch:
        x = jnp.pad(x, ((0, b_pad - batch), (0, 0)))   # batch pad only (features stay 3-wide)

    def const_spec(shape):
        # Full-array block with constant index_map -> stays VMEM-resident.
        return pl.BlockSpec(shape, lambda i: (0, 0))

    out_padded = pl.pallas_call(
        _mlp_kernel,
        grid=grid,
        out_shape=jax.ShapeDtypeStruct((b_pad, F_OUT), jnp.float32),
        in_specs=[
            pl.BlockSpec((tile_b, F_IN), lambda i: (i, 0)),     # x tile, unpadded features
            const_spec((F_IN, H1)), const_spec((1, H1)),        # layer 1 (VPU)
            const_spec((H1, H2)), const_spec((1, H2)),          # layer 2 (MXU bf16)
            const_spec((H2, H3)), const_spec((1, H3)),          # layer 3 (MXU bf16)
            const_spec((1, H3)), const_spec((1, F_OUT)),        # layer 4 (VPU reduce)
        ],
        out_specs=pl.BlockSpec((tile_b, F_OUT), lambda i: (i, 0)),
        compiler_params=pltpu.CompilerParams(
            dimension_semantics=("parallel",)),
    )(x, pp["w1"], pp["b1"], pp["w2"], pp["b2"],
      pp["w3"], pp["b3"], pp["w4"], pp["b4"])

    return out_padded[:batch, :]


def reference_forward(x, params):
    h = jnp.maximum(x @ params["w1"] + params["b1"], 0.0)
    h = jnp.maximum(h @ params["w2"] + params["b2"], 0.0)
    h = jnp.maximum(h @ params["w3"] + params["b3"], 0.0)
    return h @ params["w4"] + params["b4"]


if __name__ == "__main__":
    key = jax.random.PRNGKey(0)
    k_param, k_x1, k_x2 = jax.random.split(key, 3)
    params = init_params(k_param)
    pp = prepare_params(params)          # hoisted: prepared once, reused across calls

    fwd = jax.jit(reimbursement_net_forward)

    # Small batch: single grid step (tile_b == 16), no padding.
    x_small = jax.random.normal(k_x1, (16, F_IN), jnp.float32)
    out_small = jax.block_until_ready(fwd(x_small, pp))
    ref_small = reference_forward(x_small, params)
    assert out_small.shape == (16, F_OUT), out_small.shape
    assert jnp.allclose(out_small, ref_small, atol=2e-2, rtol=2e-2), (
        float(jnp.max(jnp.abs(out_small - ref_small))))

    # Non-multiple batch: 2 parallel/pipelined grid steps (200 -> 2 x 104 rows).
    x_big = jax.random.normal(k_x2, (200, F_IN), jnp.float32)
    out_big = jax.block_until_ready(fwd(x_big, pp))
    ref_big = reference_forward(x_big, params)
    assert out_big.shape == (200, F_OUT), out_big.shape
    assert jnp.allclose(out_big, ref_big, atol=2e-2, rtol=2e-2), (
        float(jnp.max(jnp.abs(out_big - ref_big))))

    print("KERNEL_OK")
</pallas_src>

<mosaic_0001>
module attributes {stable_mosaic.version = 11 : i64} {
  func.func @_mlp_kernel(%arg0: i32, %arg1: memref<16x3xf32, #tpu.memory_space<vmem>>, %arg2: memref<3x128xf32, #tpu.memory_space<vmem>>, %arg3: memref<1x128xf32, #tpu.memory_space<vmem>>, %arg4: memref<128x128xbf16, #tpu.memory_space<vmem>>, %arg5: memref<1x128xf32, #tpu.memory_space<vmem>>, %arg6: memref<128x64xbf16, #tpu.memory_space<vmem>>, %arg7: memref<1x64xf32, #tpu.memory_space<vmem>>, %arg8: memref<1x64xf32, #tpu.memory_space<vmem>>, %arg9: memref<1x1xf32, #tpu.memory_space<vmem>>, %arg10: memref<16x1xf32, #tpu.memory_space<vmem>>) attributes {dimension_semantics = [#tpu.dimension_semantics<parallel>], iteration_bounds = array<i64: 1>, scalar_prefetch = 0 : i64, scratch_operands = 0 : i64, tpu.core_type = #tpu.core_type<tc>, window_params = [{transform_indices = @transform_0, window_bounds = array<i64: 16, 3>}, {pipeline_mode = #tpu.pipeline_mode<synchronous>, transform_indices = @transform_1, window_bounds = array<i64: 3, 128>}, {pipeline_mode = #tpu.pipeline_mode<synchronous>, transform_indices = @transform_2, window_bounds = array<i64: 1, 128>}, {pipeline_mode = #tpu.pipeline_mode<synchronous>, transform_indices = @transform_3, window_bounds = array<i64: 128, 128>}, {pipeline_mode = #tpu.pipeline_mode<synchronous>, transform_indices = @transform_4, window_bounds = array<i64: 1, 128>}, {pipeline_mode = #tpu.pipeline_mode<synchronous>, transform_indices = @transform_5, window_bounds = array<i64: 128, 64>}, {pipeline_mode = #tpu.pipeline_mode<synchronous>, transform_indices = @transform_6, window_bounds = array<i64: 1, 64>}, {pipeline_mode = #tpu.pipeline_mode<synchronous>, transform_indices = @transform_7, window_bounds = array<i64: 1, 64>}, {pipeline_mode = #tpu.pipeline_mode<synchronous>, transform_indices = @transform_8, window_bounds = array<i64: 1, 1>}, {transform_indices = @transform_9, window_bounds = array<i64: 16, 1>}]} {
    %c0 = arith.constant 0 : index
    %c0_0 = arith.constant 0 : index
    %0 = vector.load %arg1[%c0, %c0_0] : memref<16x3xf32, #tpu.memory_space<vmem>>, vector<16x3xf32>
    %c0_1 = arith.constant 0 : index
    %c0_2 = arith.constant 0 : index
    %1 = vector.load %arg2[%c0_1, %c0_2] : memref<3x128xf32, #tpu.memory_space<vmem>>, vector<3x128xf32>
    %2 = vector.extract_strided_slice %0 {offsets = [0, 0], sizes = [16, 1], strides = [1, 1]} : vector<16x3xf32> to vector<16x1xf32>
    %3 = vector.extract_strided_slice %1 {offsets = [0, 0], sizes = [1, 128], strides = [1, 1]} : vector<3x128xf32> to vector<1x128xf32>
    %4 = vector.broadcast %2 : vector<16x1xf32> to vector<16x128xf32>
    %5 = vector.broadcast %3 : vector<1x128xf32> to vector<16x128xf32>
    %6 = arith.mulf %4, %5 : vector<16x128xf32>
    %7 = vector.extract_strided_slice %0 {offsets = [0, 1], sizes = [16, 1], strides = [1, 1]} : vector<16x3xf32> to vector<16x1xf32>
    %8 = vector.extract_strided_slice %1 {offsets = [1, 0], sizes = [1, 128], strides = [1, 1]} : vector<3x128xf32> to vector<1x128xf32>
    %9 = vector.broadcast %7 : vector<16x1xf32> to vector<16x128xf32>
    %10 = vector.broadcast %8 : vector<1x128xf32> to vector<16x128xf32>
    %11 = arith.mulf %9, %10 : vector<16x128xf32>
    %12 = arith.addf %6, %11 : vector<16x128xf32>
    %13 = vector.extract_strided_slice %0 {offsets = [0, 2], sizes = [16, 1], strides = [1, 1]} : vector<16x3xf32> to vector<16x1xf32>
    %14 = vector.extract_strided_slice %1 {offsets = [2, 0], sizes = [1, 128], strides = [1, 1]} : vector<3x128xf32> to vector<1x128xf32>
    %15 = vector.broadcast %13 : vector<16x1xf32> to vector<16x128xf32>
    %16 = vector.broadcast %14 : vector<1x128xf32> to vector<16x128xf32>
    %17 = arith.mulf %15, %16 : vector<16x128xf32>
    %18 = arith.addf %12, %17 : vector<16x128xf32>
    %c0_3 = arith.constant 0 : index
    %c0_4 = arith.constant 0 : index
    %19 = vector.load %arg3[%c0_3, %c0_4] : memref<1x128xf32, #tpu.memory_space<vmem>>, vector<1x128xf32>
    %20 = vector.broadcast %19 : vector<1x128xf32> to vector<16x128xf32>
    %21 = arith.addf %18, %20 : vector<16x128xf32>
    %cst = arith.constant 0.000000e+00 : f32
    %22 = vector.broadcast %cst : f32 to vector<16x128xf32>
    %23 = arith.maximumf %21, %22 : vector<16x128xf32>
    %24 = arith.truncf %23 : vector<16x128xf32> to vector<16x128xbf16>
    %c0_5 = arith.constant 0 : index
    %c0_6 = arith.constant 0 : index
    %25 = vector.load %arg4[%c0_5, %c0_6] : memref<128x128xbf16, #tpu.memory_space<vmem>>, vector<128x128xbf16>
    %cst_7 = arith.constant dense<0.000000e+00> : vector<16x128xf32>
    %26 = tpu.matmul %24, %25, %cst_7 {dimension_numbers = #tpu.dot_dimension_numbers<[1], [0], [0], [1], [0, 0, 1, 1], [], []>} : vector<16x128xbf16>, vector<128x128xbf16>, vector<16x128xf32> -> vector<16x128xf32>
    %c0_8 = arith.constant 0 : index
    %c0_9 = arith.constant 0 : index
    %27 = vector.load %arg5[%c0_8, %c0_9] : memref<1x128xf32, #tpu.memory_space<vmem>>, vector<1x128xf32>
    %28 = vector.broadcast %27 : vector<1x128xf32> to vector<16x128xf32>
    %29 = arith.addf %26, %28 : vector<16x128xf32>
    %cst_10 = arith.constant 0.000000e+00 : f32
    %30 = vector.broadcast %cst_10 : f32 to vector<16x128xf32>
    %31 = arith.maximumf %29, %30 : vector<16x128xf32>
    %32 = arith.truncf %31 : vector<16x128xf32> to vector<16x128xbf16>
    %c0_11 = arith.constant 0 : index
    %c0_12 = arith.constant 0 : index
    %33 = vector.load %arg6[%c0_11, %c0_12] : memref<128x64xbf16, #tpu.memory_space<vmem>>, vector<128x64xbf16>
    %cst_13 = arith.constant dense<0.000000e+00> : vector<16x64xf32>
    %34 = tpu.matmul %32, %33, %cst_13 {dimension_numbers = #tpu.dot_dimension_numbers<[1], [0], [0], [1], [0, 0, 1, 1], [], []>} : vector<16x128xbf16>, vector<128x64xbf16>, vector<16x64xf32> -> vector<16x64xf32>
    %c0_14 = arith.constant 0 : index
    %c0_15 = arith.constant 0 : index
    %35 = vector.load %arg7[%c0_14, %c0_15] : memref<1x64xf32, #tpu.memory_space<vmem>>, vector<1x64xf32>
    %36 = vector.broadcast %35 : vector<1x64xf32> to vector<16x64xf32>
    %37 = arith.addf %34, %36 : vector<16x64xf32>
    %cst_16 = arith.constant 0.000000e+00 : f32
    %38 = vector.broadcast %cst_16 : f32 to vector<16x64xf32>
    %39 = arith.maximumf %37, %38 : vector<16x64xf32>
    %c0_17 = arith.constant 0 : index
    %c0_18 = arith.constant 0 : index
    %40 = vector.load %arg8[%c0_17, %c0_18] : memref<1x64xf32, #tpu.memory_space<vmem>>, vector<1x64xf32>
    %41 = vector.broadcast %40 : vector<1x64xf32> to vector<16x64xf32>
    %42 = arith.mulf %39, %41 : vector<16x64xf32>
    %cst_19 = arith.constant dense<0.000000e+00> : vector<16xf32>
    %43 = vector.multi_reduction <add>, %42, %cst_19 [1] : vector<16x64xf32> to vector<16xf32>
    %44 = vector.shape_cast %43 : vector<16xf32> to vector<16x1xf32>
    %c0_20 = arith.constant 0 : index
    %c0_21 = arith.constant 0 : index
    %45 = vector.load %arg9[%c0_20, %c0_21] : memref<1x1xf32, #tpu.memory_space<vmem>>, vector<1x1xf32>
    %46 = vector.broadcast %45 : vector<1x1xf32> to vector<16x1xf32>
    %47 = arith.addf %44, %46 : vector<16x1xf32>
    %c0_22 = arith.constant 0 : index
    %c0_23 = arith.constant 0 : index
    %48 = vector.load %arg10[%c0_22, %c0_23] : memref<16x1xf32, #tpu.memory_space<vmem>>, vector<16x1xf32>
    tpu.vector_store %arg10[%c0_22, %c0_23], %47 {strides = array<i32>} : memref<16x1xf32, #tpu.memory_space<vmem>>, vector<16x1xf32>,
    return
  }
  func.func @transform_0(%arg0: i32) -> (i32, i32) {
    %c0_i32 = arith.constant 0 : i32
    %c0_i32_0 = arith.constant 0 : i32
    return %arg0, %c0_i32 : i32, i32
  }
  func.func @transform_1(%arg0: i32) -> (i32, i32) {
    %c0_i32 = arith.constant 0 : i32
    %c0_i32_0 = arith.constant 0 : i32
    %c0_i32_1 = arith.constant 0 : i32
    return %c0_i32, %c0_i32_0 : i32, i32
  }
  func.func @transform_2(%arg0: i32) -> (i32, i32) {
    %c0_i32 = arith.constant 0 : i32
    %c0_i32_0 = arith.constant 0 : i32
    %c0_i32_1 = arith.constant 0 : i32
    return %c0_i32, %c0_i32_0 : i32, i32
  }
  func.func @transform_3(%arg0: i32) -> (i32, i32) {
    %c0_i32 = arith.constant 0 : i32
    %c0_i32_0 = arith.constant 0 : i32
    %c0_i32_1 = arith.constant 0 : i32
    return %c0_i32, %c0_i32_0 : i32, i32
  }
  func.func @transform_4(%arg0: i32) -> (i32, i32) {
    %c0_i32 = arith.constant 0 : i32
    %c0_i32_0 = arith.constant 0 : i32
    %c0_i32_1 = arith.constant 0 : i32
    return %c0_i32, %c0_i32_0 : i32, i32
  }
  func.func @transform_5(%arg0: i32) -> (i32, i32) {
    %c0_i32 = arith.constant 0 : i32
    %c0_i32_0 = arith.constant 0 : i32
    %c0_i32_1 = arith.constant 0 : i32
    return %c0_i32, %c0_i32_0 : i32, i32
  }
  func.func @transform_6(%arg0: i32) -> (i32, i32) {
    %c0_i32 = arith.constant 0 : i32
    %c0_i32_0 = arith.constant 0 : i32
    %c0_i32_1 = arith.constant 0 : i32
    return %c0_i32, %c0_i32_0 : i32, i32
  }
  func.func @transform_7(%arg0: i32) -> (i32, i32) {
    %c0_i32 = arith.constant 0 : i32
    %c0_i32_0 = arith.constant 0 : i32
    %c0_i32_1 = arith.constant 0 : i32
    return %c0_i32, %c0_i32_0 : i32, i32
  }
  func.func @transform_8(%arg0: i32) -> (i32, i32) {
    %c0_i32 = arith.constant 0 : i32
    %c0_i32_0 = arith.constant 0 : i32
    %c0_i32_1 = arith.constant 0 : i32
    return %c0_i32, %c0_i32_0 : i32, i32
  }
  func.func @transform_9(%arg0: i32) -> (i32, i32) {
    %c0_i32 = arith.constant 0 : i32
    %c0_i32_0 = arith.constant 0 : i32
    return %arg0, %c0_i32 : i32, i32
  }
}

</mosaic_0001>

<llo_original>
// kernel: reimbursement_net_forward.1
$region0: #{reimbursement_net_forward.1}
  #allocation0 [shape = 'u32[]', space=smem, size = 0x4, offset = 0x4, fixed_abs, tag = 'smem constant byte address 0x4 - core index']
  #allocation1 [shape = 'u32[72,128]{1,0:T(1,128)}', space=vmem, size = 0x9000, scoped, tag = 'internal scratch']
  #allocation2 [shape = 'f32[1,1]{1,0:T(1,128)S(1)}', space=vmem, size = 0x200, scoped, tag = 'scoped memory for reimbursement_net_forward.1']
  %s0 = inlined_call_operand.vmem [shape: f32[16,3], index: 0, kind: input, shape index: {}]
  %s1 = inlined_call_operand.vmem [shape: f32[3,128], index: 1, kind: input, shape index: {}]
  %s2 = inlined_call_operand.vmem [shape: f32[1,128], index: 2, kind: input, shape index: {}]
  %s3 = inlined_call_operand.vmem [shape: bf16[128,128], index: 3, kind: input, shape index: {}]
  %s4 = inlined_call_operand.vmem [shape: f32[1,128], index: 4, kind: input, shape index: {}]
  %s5 = inlined_call_operand.vmem [shape: bf16[128,64], index: 5, kind: input, shape index: {}]
  %s6 = inlined_call_operand.vmem [shape: f32[1,64], index: 6, kind: input, shape index: {}]
  %s7 = inlined_call_operand.vmem [shape: f32[1,64], index: 7, kind: input, shape index: {}]
  %s8 = inlined_call_operand.<no memory space> [shape: f32[1,1], index: 8, kind: input, shape index: {}]
  %s9 = inlined_call_operand.vmem [shape: f32[16,1], index: 9, kind: output, shape index: {}]
  %s10 = sld [smem:[#allocation0]]
  $region46: #{reimbursement_net_forward.1} parent=0
    _
  %s12 = ssub.s32 1, %s10
  %s13 = scalar_select 0, %s12, %s10
  %v14 = vstv %s8
  %15 = vst [vmem:[#allocation2] sm:$0x1] %v14
  // Predicated region
  $region2: #{reimbursement_net_forward.1} parent=0 // pred_check
    _
  $region3: #{reimbursement_net_forward.1} parent=0 // pred_check_branch
    %17 = sbr.rel (0) target = $region5
  $region4: #{reimbursement_net_forward.1} parent=0 // pred_region
    _
  $region5: #{reimbursement_net_forward.1} parent=0 // pred_fallthru
    _
  // Predicated region
  $region6: #{reimbursement_net_forward.1} parent=0 // pred_check
    _
  $region7: #{reimbursement_net_forward.1} parent=0 // pred_check_branch
    %19 = sbr.rel (0) target = $region9
  $region8: #{reimbursement_net_forward.1} parent=0 // pred_region
    _
  $region9: #{reimbursement_net_forward.1} parent=0 // pred_fallthru
    _
  // Predicated region
  $region10: #{reimbursement_net_forward.1} parent=0 // pred_check
    _
  $region11: #{reimbursement_net_forward.1} parent=0 // pred_check_branch
    %21 = sbr.rel (0) target = $region13
  $region12: #{reimbursement_net_forward.1} parent=0 // pred_region
    _
  $region13: #{reimbursement_net_forward.1} parent=0 // pred_fallthru
    _
  // Predicated region
  $region14: #{reimbursement_net_forward.1} parent=0 // pred_check
    _
  $region15: #{reimbursement_net_forward.1} parent=0 // pred_check_branch
    %23 = sbr.rel (0) target = $region17
  $region16: #{reimbursement_net_forward.1} parent=0 // pred_region
    _
  $region17: #{reimbursement_net_forward.1} parent=0 // pred_fallthru
    _
  // Predicated region
  $region18: #{reimbursement_net_forward.1} parent=0 // pred_check
    _
  $region19: #{reimbursement_net_forward.1} parent=0 // pred_check_branch
    %25 = sbr.rel (0) target = $region21
  $region20: #{reimbursement_net_forward.1} parent=0 // pred_region
    _
  $region21: #{reimbursement_net_forward.1} parent=0 // pred_fallthru
    _
  // Predicated region
  $region22: #{reimbursement_net_forward.1} parent=0 // pred_check
    _
  $region23: #{reimbursement_net_forward.1} parent=0 // pred_check_branch
    %27 = sbr.rel (0) target = $region25
  $region24: #{reimbursement_net_forward.1} parent=0 // pred_region
    _
  $region25: #{reimbursement_net_forward.1} parent=0 // pred_fallthru
    _
  // Predicated region
  $region26: #{reimbursement_net_forward.1} parent=0 // pred_check
    _
  $region27: #{reimbursement_net_forward.1} parent=0 // pred_check_branch
    %29 = sbr.rel (0) target = $region29
  $region28: #{reimbursement_net_forward.1} parent=0 // pred_region
    _
  $region29: #{reimbursement_net_forward.1} parent=0 // pred_fallthru
    _
  // Predicated region
  $region30: #{reimbursement_net_forward.1} parent=0 // pred_check
    _
  $region31: #{reimbursement_net_forward.1} parent=0 // pred_check_branch
    %31 = sbr.rel (0) target = $region33
  $region32: #{reimbursement_net_forward.1} parent=0 // pred_region
    _
  $region33: #{reimbursement_net_forward.1} parent=0 // pred_fallthru
    _
  // Predicated region
  $region34: #{reimbursement_net_forward.1} parent=0 // pred_check
    _
  $region35: #{reimbursement_net_forward.1} parent=0 // pred_check_branch
    %33 = sbr.rel (0) target = $region37
  $region36: #{reimbursement_net_forward.1} parent=0 // pred_region
    _
  $region37: #{reimbursement_net_forward.1} parent=0 // pred_fallthru
    _
  %v34 = vld [vmem:[%s0] sm:$0xff]
  %v35 = vld [vmem:[%s0 + $0x8] sm:$0xff]
  %v36 = vld [vmem:[%s1] sm:$0x7]
  %38 = vset.pattern.permute.xlu0 0
  %39 = vperm.xlu0 %38, %v34
  %v40 = vpop.permute.xlu0 %39
  %43 = vset.pattern.permute.xlu0 0
  %44 = vperm.xlu0 %43, %v35
  %v45 = vpop.permute.xlu0 %44
  %v47 = vperm.slane %v36, 0
  %v48 = vmul.f32 %v40, %v47
  %v49 = vmul.f32 %v45, %v47
  %50 = vset.pattern.permute.xlu0 1
  %51 = vperm.xlu0 %50, %v34
  %v52 = vpop.permute.xlu0 %51
  %54 = vset.pattern.permute.xlu0 1
  %55 = vperm.xlu0 %54, %v35
  %v56 = vpop.permute.xlu0 %55
  %v58 = vperm.slane %v36, 1
  %v59 = vmul.f32 %v52, %v58
  %v60 = vmul.f32 %v56, %v58
  %v61 = vadd.f32 %v48, %v59
  %v62 = vadd.f32 %v49, %v60
  %63 = vset.pattern.permute.xlu0 2
  %64 = vperm.xlu0 %63, %v34
  %v65 = vpop.permute.xlu0 %64
  %67 = vset.pattern.permute.xlu0 2
  %68 = vperm.xlu0 %67, %v35
  %v69 = vpop.permute.xlu0 %68
  %v71 = vperm.slane %v36, 2
  %v72 = vmul.f32 %v65, %v71
  %v73 = vmul.f32 %v69, %v71
  %v74 = vadd.f32 %v61, %v72
  %v75 = vadd.f32 %v62, %v73
  %v76 = vld [vmem:[%s2] sm:$0x1]
  %v78 = vperm.slane %v76, 0
  %v80 = vadd.f32 %v74, %v78
  %v81 = vadd.f32 %v75, %v78
  %v82 = vmax.f32 %v80, 0.0
  %v83 = vmax.f32 %v81, 0.0
  %v84 = vpack.c.bf16 %v83, %v82
  %v85 = vld [vmem:[%s3] sm:$0xf]
  %v86 = vld [vmem:[%s3 + $0x4] sm:$0xf]
  %v87 = vld [vmem:[%s3 + $0x8] sm:$0xf]
  %v88 = vld [vmem:[%s3 + $0xc] sm:$0xf]
  %v89 = vld [vmem:[%s3 + $0x10] sm:$0xf]
  %v90 = vld [vmem:[%s3 + $0x14] sm:$0xf]
  %v91 = vld [vmem:[%s3 + $0x18] sm:$0xf]
  %v92 = vld [vmem:[%s3 + $0x1c] sm:$0xf]
  %v93 = vld [vmem:[%s3 + $0x20] sm:$0xf]
  %v94 = vld [vmem:[%s3 + $0x24] sm:$0xf]
  %v95 = vld [vmem:[%s3 + $0x28] sm:$0xf]
  %v96 = vld [vmem:[%s3 + $0x2c] sm:$0xf]
  %v97 = vld [vmem:[%s3 + $0x30] sm:$0xf]
  %v98 = vld [vmem:[%s3 + $0x34] sm:$0xf]
  %v99 = vld [vmem:[%s3 + $0x38] sm:$0xf]
  %v100 = vld [vmem:[%s3 + $0x3c] sm:$0xf]
  %v101 = vld [vmem:[%s4] sm:$0x1]
  %v103 = vperm.slane %v101, 0
  %v121 = vunpack.c.l.b16 %v85
  %v122 = vunpack.c.l.b16 %v86
  %v123 = vunpack.c.l.b16 %v87
  %v124 = vunpack.c.l.b16 %v88
  %v125 = vunpack.c.l.b16 %v89
  %v126 = vunpack.c.l.b16 %v90
  %v127 = vunpack.c.l.b16 %v91
  %v128 = vunpack.c.l.b16 %v92
  %v129 = vunpack.c.l.b16 %v93
  %v130 = vunpack.c.l.b16 %v94
  %v131 = vunpack.c.l.b16 %v95
  %v132 = vunpack.c.l.b16 %v96
  %v133 = vunpack.c.l.b16 %v97
  %v134 = vunpack.c.l.b16 %v98
  %v135 = vunpack.c.l.b16 %v99
  %v136 = vunpack.c.l.b16 %v100
  %v137 = vpack.c.b16 %v122, %v121
  %v138 = vpack.c.b16 %v124, %v123
  %v139 = vpack.c.b16 %v126, %v125
  %v140 = vpack.c.b16 %v128, %v127
  %v141 = vpack.c.b16 %v130, %v129
  %v142 = vpack.c.b16 %v132, %v131
  %v143 = vpack.c.b16 %v134, %v133
  %v144 = vpack.c.b16 %v136, %v135
  %153 = vmatpush.bf16.msra.mxu0 %v144
  %154 = vmatpush.bf16.msra.mxu0 %v143
  %155 = vmatpush.bf16.msra.mxu0 %v142
  %156 = vmatpush.bf16.msra.mxu0 %v141
  %157 = vmatpush.bf16.msra.mxu0 %v140
  %158 = vmatpush.bf16.msra.mxu0 %v139
  %159 = vmatpush.bf16.msra.mxu0 %v138
  %160 = vmatpush.bf16.msra.mxu0 %v137
  %161 = vmatmul.bf16.gmra.mxu0 %v84
  %v162 = vpop.f32.mrf.mxu0
  %v163 = vadd.f32 %v103, %v162
  %v164 = vpop.f32.mrf.mxu0
  %v165 = vadd.f32 %v103, %v164
  %166 = vdwg.mxu0
  %v167 = vmax.f32 %v163, 0.0
  %v168 = vmax.f32 %v165, 0.0
  %v169 = vpack.c.bf16 %v168, %v167
  %v170 = vld [vmem:[%s5] sm:$0xf]
  %v171 = vld [vmem:[%s5 + $0x4] sm:$0xf]
  %v172 = vld [vmem:[%s5 + $0x8] sm:$0xf]
  %v173 = vld [vmem:[%s5 + $0xc] sm:$0xf]
  %v174 = vld [vmem:[%s5 + $0x10] sm:$0xf]
  %v175 = vld [vmem:[%s5 + $0x14] sm:$0xf]
  %v176 = vld [vmem:[%s5 + $0x18] sm:$0xf]
  %v177 = vld [vmem:[%s5 + $0x1c] sm:$0xf]
  %v178 = vld [vmem:[%s5 + $0x20] sm:$0xf]
  %v179 = vld [vmem:[%s5 + $0x24] sm:$0xf]
  %v180 = vld [vmem:[%s5 + $0x28] sm:$0xf]
  %v181 = vld [vmem:[%s5 + $0x2c] sm:$0xf]
  %v182 = vld [vmem:[%s5 + $0x30] sm:$0xf]
  %v183 = vld [vmem:[%s5 + $0x34] sm:$0xf]
  %v184 = vld [vmem:[%s5 + $0x38] sm:$0xf]
  %v185 = vld [vmem:[%s5 + $0x3c] sm:$0xf]
  %v186 = vld [vmem:[%s6] sm:$0x1]
  %v188 = vperm.slane %v186, 0
  %v206 = vunpack.c.l.b16 %v170
  %v207 = vunpack.c.l.b16 %v171
  %v208 = vunpack.c.l.b16 %v172
  %v209 = vunpack.c.l.b16 %v173
  %v210 = vunpack.c.l.b16 %v174
  %v211 = vunpack.c.l.b16 %v175
  %v212 = vunpack.c.l.b16 %v176
  %v213 = vunpack.c.l.b16 %v177
  %v214 = vunpack.c.l.b16 %v178
  %v215 = vunpack.c.l.b16 %v179
  %v216 = vunpack.c.l.b16 %v180
  %v217 = vunpack.c.l.b16 %v181
  %v218 = vunpack.c.l.b16 %v182
  %v219 = vunpack.c.l.b16 %v183
  %v220 = vunpack.c.l.b16 %v184
  %v221 = vunpack.c.l.b16 %v185
  %v222 = vpack.c.b16 %v207, %v206
  %v223 = vpack.c.b16 %v209, %v208
  %v224 = vpack.c.b16 %v211, %v210
  %v225 = vpack.c.b16 %v213, %v212
  %v226 = vpack.c.b16 %v215, %v214
  %v227 = vpack.c.b16 %v217, %v216
  %v228 = vpack.c.b16 %v219, %v218
  %v229 = vpack.c.b16 %v221, %v220
  %238 = vmatpush.bf16.msra.mxu0 %v229
  %239 = vmatpush.bf16.msra.mxu0 %v228
  %240 = vmatpush.bf16.msra.mxu0 %v227
  %241 = vmatpush.bf16.msra.mxu0 %v226
  %242 = vmatpush.bf16.msra.mxu0 %v225
  %243 = vmatpush.bf16.msra.mxu0 %v224
  %244 = vmatpush.bf16.msra.mxu0 %v223
  %245 = vmatpush.bf16.msra.mxu0 %v222
  %246 = vmatmul.bf16.gmra.mxu0 %v169
  %v247 = vpop.f32.mrf.mxu0
  %v248 = vadd.f32 %v188, %v247
  %v249 = vpop.f32.mrf.mxu0
  %v250 = vadd.f32 %v188, %v249
  %251 = vdwg.mxu0
  %v252 = vmax.f32 %v248, 0.0
  %v253 = vmax.f32 %v250, 0.0
  %v254 = vld [vmem:[%s7] sm:$0x1]
  %v256 = vperm.slane %v254, 0
  %v258 = vmul.f32 %v252, %v256
  %v259 = vmul.f32 %v253, %v256
  %vm260 = vcmask 523264
  %v261 = vsel %vm260, %v258, 0.0
  %262 = vadd.xlane.f32.xlu0 %v261
  %v263 = vpop.xlane.xlu0 %262
  %v264 = vsel %vm260, %v259, 0.0
  %265 = vadd.xlane.f32.xlu0 %v264
  %v266 = vpop.xlane.xlu0 %265
  %v267 = vld [vmem:[#allocation2] sm:$0x1]
  %v269 = vperm.slane %v267, 0
  %v271 = vadd.f32 %v263, %v269
  %v272 = vadd.f32 %v266, %v269
  %vm273 = vcmask 7168
  %274 = vst.msk [vmem:[%s9] sm:$0xff] %vm273, %v271
  %275 = vst.msk [vmem:[%s9 + $0x8] sm:$0xff] %vm273, %v272
  // Predicated region
  $region38: #{reimbursement_net_forward.1} parent=0 // pred_check
    _
  $region39: #{reimbursement_net_forward.1} parent=0 // pred_check_branch
    %277 = sbr.rel (0) target = $region41
  $region40: #{reimbursement_net_forward.1} parent=0 // pred_region
    _
  $region41: #{reimbursement_net_forward.1} parent=0 // pred_fallthru
    _
  // Predicated region
  $region42: #{reimbursement_net_forward.1} parent=0 // pred_check
    _
  $region43: #{reimbursement_net_forward.1} parent=0 // pred_check_branch
    %279 = sbr.rel (0) target = $region45
  $region44: #{reimbursement_net_forward.1} parent=0 // pred_region
    _
  $region45: #{reimbursement_net_forward.1} parent=0 // pred_fallthru
    _

</llo_original>
